<compile_context>
chip_gen: v5e
topology: v5e:2x2
jax: 0.10.0
libtpu: 0.0.40
codegen_flags: <defaults>
</compile_context>

<pallas_src>
import numpy as np
import jax
import jax.numpy as jnp
from jax.experimental import pallas as pl
from jax.experimental.pallas import tpu as pltpu

LRELU_SLOPE = 0.2
LANE = 128
SUBLANE = 8
MAX_ROW_BLOCK = 512        # amortizes the ~0.35us/grid-step overhead; VMEM is tiny


def _leaky_relu(x):
    return jnp.where(x > 0, x, LRELU_SLOPE * x)


def _round_up(x, m):
    return -(-x // m) * m


# --------------------------------- kernel ---------------------------------

def _memenc_kernel(hdst_ref, hsrc_ref, w1_ref, b1_ref, w2_ref, out_ref):
    """Fused MemoryEncoding forward for one row block.

    hdst (Br, in) f32, hsrc (Br, in) f32
    w1   (in, mem)          bf16   == linear_coef.weight.T
    b1   (1, mem)           f32    == linear_coef.bias
    w2   (mem*in, out_pad)  bf16   with w2[m*in+i, o] = linear_w.weight[o*in+i, m]
    out  (Br, out_pad)      f32    lane-dense; columns >= out_feats are exact zeros
    """
    mem = w1_ref.shape[1]

    # coef = LeakyReLU(h_dst @ W1 + b1): MXU in bf16, f32 accumulate, f32 VPU math.
    coef = jnp.dot(hdst_ref[...].astype(jnp.bfloat16), w1_ref[...],
                   preferred_element_type=jnp.float32)               # (Br, mem)
    coef = _leaky_relu(coef + b1_ref[...])

    # LHS[b, m*in + i] = coef[b, m] * h_src[b, i]  (mem cheap 32-lane pieces,
    # concatenated along lanes) -> ONE K = mem*in MXU contraction.
    hsrc = hsrc_ref[...]                                             # (Br, in) f32
    lhs = jnp.concatenate([coef[:, m:m + 1] * hsrc for m in range(mem)],
                          axis=1).astype(jnp.bfloat16)               # (Br, mem*in)

    # res[b, o] = sum_{m,i} coef[b,m] * hsrc[b,i] * w2[m*in+i, o]
    out_ref[...] = jnp.dot(lhs, w2_ref[...],
                           preferred_element_type=jnp.float32)       # (Br, out_pad)


# ------------------------------ host wrappers ------------------------------

def prepare_kernel_params(W_coef, b_coef, W_w):
    """One-time repack of PyTorch-layout weights into kernel-ready tensors."""
    mem, in_f = W_coef.shape                      # linear_coef.weight: (mem, in)
    out_f = W_w.shape[0] // in_f                  # linear_w.weight: (out*in, mem)
    out_pad = _round_up(out_f, LANE)              # lane-dense output slab

    w1 = W_coef.T.astype(jnp.bfloat16)                              # (in, mem)
    b1 = b_coef.reshape(1, mem).astype(jnp.float32)                 # (1, mem)

    # w2[m*in + i, o] = linear_w.weight[o*in + i, m], zero-padded out -> out_pad.
    w2 = jnp.transpose(W_w.reshape(out_f, in_f, mem), (2, 1, 0))    # (mem, in, out)
    w2 = jnp.pad(w2, ((0, 0), (0, 0), (0, out_pad - out_f)))        # zero columns
    w2 = w2.reshape(mem * in_f, out_pad).astype(jnp.bfloat16)       # (mem*in, out_pad)

    return dict(w1=w1, b1=b1, w2=w2,
                in_feats=in_f, out_feats=out_f, out_pad=out_pad, mem=mem)


def _pick_row_block(B):
    if B <= 256:
        return B                       # single whole-array block (legal for any B)
    # >= 2 row blocks so both v7x TensorCores get work; cap rows/block at 512.
    return min(MAX_ROW_BLOCK, _round_up(-(-B // 2), SUBLANE))


def memory_encoding_forward(kp, h_dst, h_src):
    """MemoryEncoding.forward(h_dst, h_src) -> (B, out_feats); one pallas_call."""
    B, in_f = h_dst.shape
    out_pad = kp['out_pad']
    row_block = _pick_row_block(B)
    grid = (pl.cdiv(B, row_block),)    # ragged edge block masked by Pallas

    # NOTE: weight/bias blocks are grid-invariant (index_map -> (0, 0)); Pallas
    # skips their re-DMA across steps.  pl.Buffered(1) would also drop the
    # second VMEM buffer, but the ~70 KB saving is negligible here.
    out = pl.pallas_call(
        _memenc_kernel,
        grid=grid,
        in_specs=[
            pl.BlockSpec((row_block, in_f), lambda i: (i, 0)),
            pl.BlockSpec((row_block, in_f), lambda i: (i, 0)),
            pl.BlockSpec(kp['w1'].shape, lambda i: (0, 0)),
            pl.BlockSpec(kp['b1'].shape, lambda i: (0, 0)),
            pl.BlockSpec(kp['w2'].shape, lambda i: (0, 0)),
        ],
        out_specs=pl.BlockSpec((row_block, out_pad), lambda i: (i, 0)),
        out_shape=jax.ShapeDtypeStruct((B, out_pad), jnp.float32),
        compiler_params=pltpu.CompilerParams(
            dimension_semantics=("parallel",)),   # row blocks shard across TCs
    )(h_dst, h_src, kp['w1'], kp['b1'], kp['w2'])

    # Only the (cheap) column slice remains; padded columns are exact zeros.
    return out[:, :kp['out_feats']]


# ------------------------------ pure-JAX reference ------------------------------

def memory_encoding_ref(W_coef, b_coef, W_w, h_dst, h_src):
    in_f = h_dst.shape[1]
    out_f = W_w.shape[0] // in_f
    coef = _leaky_relu(h_dst @ W_coef.T + b_coef[None, :])
    w = (coef @ W_w.T).reshape(-1, out_f, in_f)
    return jnp.einsum('boi,bi->bo', w, h_src)


# ------------------------------------ main ------------------------------------

if __name__ == "__main__":
    IN_FEATS, OUT_FEATS, MEM_SIZE, BATCH = 32, 32, 8, 16

    key = jax.random.PRNGKey(0)
    k1, k2, k3, k4, k5 = jax.random.split(key, 5)

    # PyTorch-layout parameters.
    W_coef = 0.2 * jax.random.normal(k1, (MEM_SIZE, IN_FEATS), jnp.float32)           # linear_coef.weight
    b_coef = 0.2 * jax.random.normal(k2, (MEM_SIZE,), jnp.float32)                    # linear_coef.bias
    W_w = 0.2 * jax.random.normal(k3, (OUT_FEATS * IN_FEATS, MEM_SIZE), jnp.float32)  # linear_w.weight

    h_dst = jax.random.normal(k4, (BATCH, IN_FEATS), jnp.float32)
    h_src = jax.random.normal(k5, (BATCH, IN_FEATS), jnp.float32)

    kp = prepare_kernel_params(W_coef, b_coef, W_w)
    fwd = jax.jit(lambda hd, hs: memory_encoding_forward(kp, hd, hs))

    res = fwd(h_dst, h_src)
    jax.block_until_ready(res)

    # bf16 MXU operands vs the f32 reference -> loose tolerance by design.
    ref = memory_encoding_ref(W_coef, b_coef, W_w, h_dst, h_src)
    np.testing.assert_allclose(np.asarray(res), np.asarray(ref), rtol=5e-2, atol=5e-2)
    assert res.shape == (BATCH, OUT_FEATS)
    print("KERNEL_OK")
</pallas_src>

<mosaic_0001>
module attributes {stable_mosaic.version = 11 : i64} {
  func.func @_memenc_kernel(%arg0: i32, %arg1: memref<16x32xf32, #tpu.memory_space<vmem>>, %arg2: memref<16x32xf32, #tpu.memory_space<vmem>>, %arg3: memref<32x8xbf16, #tpu.memory_space<vmem>>, %arg4: memref<1x8xf32, #tpu.memory_space<vmem>>, %arg5: memref<256x128xbf16, #tpu.memory_space<vmem>>, %arg6: memref<16x128xf32, #tpu.memory_space<vmem>>) attributes {dimension_semantics = [#tpu.dimension_semantics<parallel>], iteration_bounds = array<i64: 1>, scalar_prefetch = 0 : i64, scratch_operands = 0 : i64, tpu.core_type = #tpu.core_type<tc>, window_params = [{transform_indices = @transform_0, window_bounds = array<i64: 16, 32>}, {transform_indices = @transform_1, window_bounds = array<i64: 16, 32>}, {pipeline_mode = #tpu.pipeline_mode<synchronous>, transform_indices = @transform_2, window_bounds = array<i64: 32, 8>}, {pipeline_mode = #tpu.pipeline_mode<synchronous>, transform_indices = @transform_3, window_bounds = array<i64: 1, 8>}, {pipeline_mode = #tpu.pipeline_mode<synchronous>, transform_indices = @transform_4, window_bounds = array<i64: 256, 128>}, {transform_indices = @transform_5, window_bounds = array<i64: 16, 128>}]} {
    %c0 = arith.constant 0 : index
    %c0_0 = arith.constant 0 : index
    %0 = vector.load %arg1[%c0, %c0_0] : memref<16x32xf32, #tpu.memory_space<vmem>>, vector<16x32xf32>
    %1 = arith.truncf %0 : vector<16x32xf32> to vector<16x32xbf16>
    %c0_1 = arith.constant 0 : index
    %c0_2 = arith.constant 0 : index
    %2 = vector.load %arg3[%c0_1, %c0_2] : memref<32x8xbf16, #tpu.memory_space<vmem>>, vector<32x8xbf16>
    %cst = arith.constant dense<0.000000e+00> : vector<16x8xf32>
    %3 = tpu.matmul %1, %2, %cst {dimension_numbers = #tpu.dot_dimension_numbers<[1], [0], [0], [1], [0, 0, 1, 1], [], []>} : vector<16x32xbf16>, vector<32x8xbf16>, vector<16x8xf32> -> vector<16x8xf32>
    %c0_3 = arith.constant 0 : index
    %c0_4 = arith.constant 0 : index
    %4 = vector.load %arg4[%c0_3, %c0_4] : memref<1x8xf32, #tpu.memory_space<vmem>>, vector<1x8xf32>
    %5 = vector.broadcast %4 : vector<1x8xf32> to vector<16x8xf32>
    %6 = arith.addf %3, %5 : vector<16x8xf32>
    %cst_5 = arith.constant 0.000000e+00 : f32
    %7 = vector.broadcast %cst_5 : f32 to vector<16x8xf32>
    %8 = arith.cmpf ogt, %6, %7 : vector<16x8xf32>
    %cst_6 = arith.constant 2.000000e-01 : f32
    %9 = vector.broadcast %cst_6 : f32 to vector<16x8xf32>
    %10 = arith.mulf %9, %6 : vector<16x8xf32>
    %11 = arith.select %8, %6, %10 : vector<16x8xi1>, vector<16x8xf32>
    %c0_7 = arith.constant 0 : index
    %c0_8 = arith.constant 0 : index
    %12 = vector.load %arg2[%c0_7, %c0_8] : memref<16x32xf32, #tpu.memory_space<vmem>>, vector<16x32xf32>
    %13 = vector.extract_strided_slice %11 {offsets = [0, 0], sizes = [16, 1], strides = [1, 1]} : vector<16x8xf32> to vector<16x1xf32>
    %14 = vector.broadcast %13 : vector<16x1xf32> to vector<16x32xf32>
    %15 = arith.mulf %14, %12 : vector<16x32xf32>
    %16 = vector.extract_strided_slice %11 {offsets = [0, 1], sizes = [16, 1], strides = [1, 1]} : vector<16x8xf32> to vector<16x1xf32>
    %17 = vector.broadcast %16 : vector<16x1xf32> to vector<16x32xf32>
    %18 = arith.mulf %17, %12 : vector<16x32xf32>
    %19 = vector.extract_strided_slice %11 {offsets = [0, 2], sizes = [16, 1], strides = [1, 1]} : vector<16x8xf32> to vector<16x1xf32>
    %20 = vector.broadcast %19 : vector<16x1xf32> to vector<16x32xf32>
    %21 = arith.mulf %20, %12 : vector<16x32xf32>
    %22 = vector.extract_strided_slice %11 {offsets = [0, 3], sizes = [16, 1], strides = [1, 1]} : vector<16x8xf32> to vector<16x1xf32>
    %23 = vector.broadcast %22 : vector<16x1xf32> to vector<16x32xf32>
    %24 = arith.mulf %23, %12 : vector<16x32xf32>
    %25 = vector.extract_strided_slice %11 {offsets = [0, 4], sizes = [16, 1], strides = [1, 1]} : vector<16x8xf32> to vector<16x1xf32>
    %26 = vector.broadcast %25 : vector<16x1xf32> to vector<16x32xf32>
    %27 = arith.mulf %26, %12 : vector<16x32xf32>
    %28 = vector.extract_strided_slice %11 {offsets = [0, 5], sizes = [16, 1], strides = [1, 1]} : vector<16x8xf32> to vector<16x1xf32>
    %29 = vector.broadcast %28 : vector<16x1xf32> to vector<16x32xf32>
    %30 = arith.mulf %29, %12 : vector<16x32xf32>
    %31 = vector.extract_strided_slice %11 {offsets = [0, 6], sizes = [16, 1], strides = [1, 1]} : vector<16x8xf32> to vector<16x1xf32>
    %32 = vector.broadcast %31 : vector<16x1xf32> to vector<16x32xf32>
    %33 = arith.mulf %32, %12 : vector<16x32xf32>
    %34 = vector.extract_strided_slice %11 {offsets = [0, 7], sizes = [16, 1], strides = [1, 1]} : vector<16x8xf32> to vector<16x1xf32>
    %35 = vector.broadcast %34 : vector<16x1xf32> to vector<16x32xf32>
    %36 = arith.mulf %35, %12 : vector<16x32xf32>
    %37 = tpu.concatenate %15, %18, %21, %24, %27, %30, %33, %36 in 1 : vector<16x32xf32>, vector<16x32xf32>, vector<16x32xf32>, vector<16x32xf32>, vector<16x32xf32>, vector<16x32xf32>, vector<16x32xf32>, vector<16x32xf32> -> vector<16x256xf32>
    %38 = arith.truncf %37 : vector<16x256xf32> to vector<16x256xbf16>
    %c0_9 = arith.constant 0 : index
    %c0_10 = arith.constant 0 : index
    %39 = vector.load %arg5[%c0_9, %c0_10] : memref<256x128xbf16, #tpu.memory_space<vmem>>, vector<256x128xbf16>
    %cst_11 = arith.constant dense<0.000000e+00> : vector<16x128xf32>
    %40 = tpu.matmul %38, %39, %cst_11 {dimension_numbers = #tpu.dot_dimension_numbers<[1], [0], [0], [1], [0, 0, 1, 1], [], []>} : vector<16x256xbf16>, vector<256x128xbf16>, vector<16x128xf32> -> vector<16x128xf32>
    %c0_12 = arith.constant 0 : index
    %c0_13 = arith.constant 0 : index
    %41 = vector.load %arg6[%c0_12, %c0_13] : memref<16x128xf32, #tpu.memory_space<vmem>>, vector<16x128xf32>
    tpu.vector_store %arg6[%c0_12, %c0_13], %40 {strides = array<i32>} : memref<16x128xf32, #tpu.memory_space<vmem>>, vector<16x128xf32>,
    return
  }
  func.func @transform_0(%arg0: i32) -> (i32, i32) {
    %c0_i32 = arith.constant 0 : i32
    %c0_i32_0 = arith.constant 0 : i32
    return %arg0, %c0_i32 : i32, i32
  }
  func.func @transform_1(%arg0: i32) -> (i32, i32) {
    %c0_i32 = arith.constant 0 : i32
    %c0_i32_0 = arith.constant 0 : i32
    return %arg0, %c0_i32 : i32, i32
  }
  func.func @transform_2(%arg0: i32) -> (i32, i32) {
    %c0_i32 = arith.constant 0 : i32
    %c0_i32_0 = arith.constant 0 : i32
    %c0_i32_1 = arith.constant 0 : i32
    return %c0_i32, %c0_i32_0 : i32, i32
  }
  func.func @transform_3(%arg0: i32) -> (i32, i32) {
    %c0_i32 = arith.constant 0 : i32
    %c0_i32_0 = arith.constant 0 : i32
    %c0_i32_1 = arith.constant 0 : i32
    return %c0_i32, %c0_i32_0 : i32, i32
  }
  func.func @transform_4(%arg0: i32) -> (i32, i32) {
    %c0_i32 = arith.constant 0 : i32
    %c0_i32_0 = arith.constant 0 : i32
    %c0_i32_1 = arith.constant 0 : i32
    return %c0_i32, %c0_i32_0 : i32, i32
  }
  func.func @transform_5(%arg0: i32) -> (i32, i32) {
    %c0_i32 = arith.constant 0 : i32
    %c0_i32_0 = arith.constant 0 : i32
    return %arg0, %c0_i32 : i32, i32
  }
}

</mosaic_0001>

<llo_original>
// kernel: _lambda_.1
$region0: #{_lambda_.1}
  #allocation0 [shape = 'u32[]', space=smem, size = 0x4, offset = 0x4, fixed_abs, tag = 'smem constant byte address 0x4 - core index']
  #allocation1 [shape = 'u32[72,128]{1,0:T(1,128)}', space=vmem, size = 0x9000, scoped, tag = 'internal scratch']
  %s0 = inlined_call_operand.hbm [shape: f32[16,32], index: 0, kind: input, shape index: {}]
  %s1 = inlined_call_operand.hbm [shape: f32[16,32], index: 1, kind: input, shape index: {}]
  %s2 = inlined_call_operand.hbm [shape: bf16[32,8], index: 2, kind: input, shape index: {}]
  %s3 = inlined_call_operand.vmem [shape: f32[1,8], index: 3, kind: input, shape index: {}]
  %s4 = inlined_call_operand.hbm [shape: bf16[256,128], index: 4, kind: input, shape index: {}]
  %s5 = inlined_call_operand.hbm [shape: f32[16,128], index: 5, kind: output, shape index: {}]
  %s6 = sld [smem:[#allocation0]]
  $region46: #{_lambda_.1} parent=0
    _
  %s8 = ssub.s32 1, %s6
  %s9 = scalar_select 0, %s8, %s6
  $region1: #{_lambda_.1} parent=0
    #allocation2 [shape = 'u8[8192]{0}', space=vmem, size = 0x2000, scoped, tag = 'input window, operand 0, single buffered']
    #allocation3 [shape = 's32[1]{0}', space=sflag, size = 0x4, scoped, tag = 'scoped memory for _lambda_.1']
    #allocation4 [shape = 's32[1]{0}', space=sflag, size = 0x4, scoped, tag = 'scoped memory for _lambda_.1']
    #allocation5 [shape = 'u8[8192]{0}', space=vmem, size = 0x2000, scoped, tag = 'input window, operand 1, single buffered']
    #allocation6 [shape = 's32[1]{0}', space=sflag, size = 0x4, scoped, tag = 'scoped memory for _lambda_.1']
    #allocation7 [shape = 'u8[8192]{0}', space=vmem, size = 0x2000, scoped, tag = 'input window, operand 2, single buffered']
    #allocation8 [shape = 'u8[65536]{0}', space=vmem, size = 0x10000, scoped, tag = 'input window, operand 4, single buffered']
    #allocation9 [shape = 's32[1]{0}', space=sflag, size = 0x4, scoped, tag = 'scoped memory for _lambda_.1']
    #allocation10 [shape = 'u8[8192]{0}', space=vmem, size = 0x2000, scoped, tag = 'output window, operand 0, single buffered']
    %10 = vsyncpa [#allocation3], 0
    %11 = vsyncpa [#allocation6], 0
    %12 = vsyncpa [#allocation9], 0
    %13 = vsyncpa [#allocation4], 0
    // Predicated region
    $region2: #{_lambda_.1} parent=1 // pred_check
      _
    $region3: #{_lambda_.1} parent=1 // pred_check_branch
      %15 = sbr.rel (0) target = $region5
    $region4: #{_lambda_.1} parent=1 // pred_region
      %17 = vsyncadd [#allocation3], 0
      %s18 = sshll.u32 %s0, 4
      %s19 = int_to_ptr.hbm [resolvable:$true] %s18
      %s20 = sshll.u32 [#allocation2], 4
      %s21 = int_to_ptr.vmem [resolvable:$true] %s20
      %26 = dma.hbm_to_vmem [thread:$0]  %s19, 256, %s21, [#allocation3], 128, 128, 8
    $region5: #{_lambda_.1} parent=1 // pred_fallthru
      _
    // Predicated region
    $region6: #{_lambda_.1} parent=1 // pred_check
      _
    $region7: #{_lambda_.1} parent=1 // pred_check_branch
      %28 = sbr.rel (0) target = $region9
    $region8: #{_lambda_.1} parent=1 // pred_region
      %30 = vsyncadd [#allocation6], 0
      %s31 = sshll.u32 %s1, 4
      %s32 = int_to_ptr.hbm [resolvable:$true] %s31
      %s33 = sshll.u32 [#allocation5], 4
      %s34 = int_to_ptr.vmem [resolvable:$true] %s33
      %39 = dma.hbm_to_vmem [thread:$0]  %s32, 256, %s34, [#allocation6], 128, 128, 8
    $region9: #{_lambda_.1} parent=1 // pred_fallthru
      _
    // Predicated region
    $region10: #{_lambda_.1} parent=1 // pred_check
      _
    $region11: #{_lambda_.1} parent=1 // pred_check_branch
      %41 = sbr.rel (0) target = $region13
    $region12: #{_lambda_.1} parent=1 // pred_region
      %43 = vsyncadd [#allocation6], 0
      %s44 = sshll.u32 %s2, 4
      %s45 = int_to_ptr.hbm [resolvable:$true] %s44
      %s46 = sshll.u32 [#allocation7], 4
      %s47 = int_to_ptr.vmem [resolvable:$true] %s46
      %52 = dma.hbm_to_vmem [thread:$0]  %s45, 256, %s47, [#allocation6], 64, 64, 4
    $region13: #{_lambda_.1} parent=1 // pred_fallthru
      _
    // Predicated region
    $region14: #{_lambda_.1} parent=1 // pred_check
      _
    $region15: #{_lambda_.1} parent=1 // pred_check_branch
      %54 = sbr.rel (0) target = $region17
    $region16: #{_lambda_.1} parent=1 // pred_region
      _
    $region17: #{_lambda_.1} parent=1 // pred_fallthru
      _
    // Predicated region
    $region18: #{_lambda_.1} parent=1 // pred_check
      _
    $region19: #{_lambda_.1} parent=1 // pred_check_branch
      %56 = sbr.rel (0) target = $region21
    $region20: #{_lambda_.1} parent=1 // pred_region
      %58 = vsyncadd [#allocation9], 0
      %s59 = sshll.u32 %s4, 4
      %s60 = int_to_ptr.hbm [resolvable:$true] %s59
      %s61 = sshll.u32 [#allocation8], 4
      %s62 = int_to_ptr.vmem [resolvable:$true] %s61
      %67 = dma.hbm_to_vmem [thread:$0]  %s60, 2048, %s62, [#allocation9], 64, 64, 4
    $region21: #{_lambda_.1} parent=1 // pred_fallthru
      _
    // Predicated region
    $region22: #{_lambda_.1} parent=1 // pred_check
      _
    $region23: #{_lambda_.1} parent=1 // pred_check_branch
      %69 = sbr.rel (0) target = $region25
    $region24: #{_lambda_.1} parent=1 // pred_region
      %71 = dma.done [#allocation3], 256
    $region25: #{_lambda_.1} parent=1 // pred_fallthru
      _
    // Predicated region
    $region26: #{_lambda_.1} parent=1 // pred_check
      _
    $region27: #{_lambda_.1} parent=1 // pred_check_branch
      %73 = sbr.rel (0) target = $region29
    $region28: #{_lambda_.1} parent=1 // pred_region
      %75 = dma.done [#allocation6], 256
    $region29: #{_lambda_.1} parent=1 // pred_fallthru
      _
    // Predicated region
    $region30: #{_lambda_.1} parent=1 // pred_check
      _
    $region31: #{_lambda_.1} parent=1 // pred_check_branch
      %77 = sbr.rel (0) target = $region33
    $region32: #{_lambda_.1} parent=1 // pred_region
      %79 = dma.done [#allocation6], 256
    $region33: #{_lambda_.1} parent=1 // pred_fallthru
      _
    // Predicated region
    $region34: #{_lambda_.1} parent=1 // pred_check
      _
    $region35: #{_lambda_.1} parent=1 // pred_check_branch
      %81 = sbr.rel (0) target = $region37
    $region36: #{_lambda_.1} parent=1 // pred_region
      %83 = dma.done [#allocation9], 2048
    $region37: #{_lambda_.1} parent=1 // pred_fallthru
      _
    %v85 = vld [vmem:[#allocation2] sm:$0xff]
    %v86 = vld [vmem:[#allocation2 + $0x8] sm:$0xff]
    %v87 = vpack.c.bf16 %v86, %v85
    %v88 = vld [vmem:[#allocation7] sm:$0xf]
    %v89 = vld [vmem:[#allocation7 + $0x4] sm:$0xf]
    %v90 = vld [vmem:[#allocation7 + $0x8] sm:$0xf]
    %v91 = vld [vmem:[#allocation7 + $0xc] sm:$0xf]
    %v92 = vld [vmem:[%s3] sm:$0x1]
    %v94 = vperm.slane %v92, 0
    %v100 = vunpack.c.l.b16 %v88
    %v101 = vunpack.c.l.b16 %v89
    %v102 = vunpack.c.l.b16 %v90
    %v103 = vunpack.c.l.b16 %v91
    %v104 = vpack.c.b16 %v101, %v100
    %v105 = vpack.c.b16 %v103, %v102
    %vm108 = vcmask 261120
    %v110 = vsel %vm108, %v87, 0
    %112 = vmatpush.bf16.msra.mxu0 0
    %113 = vmatpush.bf16.msra.mxu0 0
    %114 = vmatpush.bf16.msra.mxu0 0
    %115 = vmatpush.bf16.msra.mxu0 0
    %116 = vmatpush.bf16.msra.mxu0 0
    %117 = vmatpush.bf16.msra.mxu0 0
    %118 = vmatpush.bf16.msra.mxu0 %v105
    %119 = vmatpush.bf16.msra.mxu0 %v104
    %120 = vmatmul.bf16.gmra.mxu0 %v110
    %v121 = vpop.f32.mrf.mxu0
    %v122 = vadd.f32 %v94, %v121
    %v123 = vpop.f32.mrf.mxu0
    %v124 = vadd.f32 %v94, %v123
    %125 = vdwg.mxu0
    %vm126 = vcmp.gt.f32.partialorder %v122, 0.0
    %vm127 = vcmp.gt.f32.partialorder %v124, 0.0
    %v128 = vmul.f32 %v122, 0.2
    %v129 = vmul.f32 %v124, 0.2
    %v130 = vsel %vm126, %v122, %v128
    %v131 = vsel %vm127, %v124, %v129
    %v132 = vld [vmem:[#allocation5] sm:$0xff]
    %v133 = vld [vmem:[#allocation5 + $0x8] sm:$0xff]
    %135 = vset.pattern.permute.xlu0 0
    %136 = vperm.xlu0 %135, %v130
    %v137 = vpop.permute.xlu0 %136
    %140 = vset.pattern.permute.xlu0 0
    %141 = vperm.xlu0 %140, %v131
    %v142 = vpop.permute.xlu0 %141
    %v144 = vmul.f32 %v137, %v132
    %v145 = vmul.f32 %v142, %v133
    %146 = vset.pattern.permute.xlu0 1
    %147 = vperm.xlu0 %146, %v130
    %v148 = vpop.permute.xlu0 %147
    %150 = vset.pattern.permute.xlu0 1
    %151 = vperm.xlu0 %150, %v131
    %v152 = vpop.permute.xlu0 %151
    %v154 = vmul.f32 %v148, %v132
    %v155 = vmul.f32 %v152, %v133
    %156 = vset.pattern.permute.xlu0 2
    %157 = vperm.xlu0 %156, %v130
    %v158 = vpop.permute.xlu0 %157
    %160 = vset.pattern.permute.xlu0 2
    %161 = vperm.xlu0 %160, %v131
    %v162 = vpop.permute.xlu0 %161
    %v164 = vmul.f32 %v158, %v132
    %v165 = vmul.f32 %v162, %v133
    %166 = vset.pattern.permute.xlu0 3
    %167 = vperm.xlu0 %166, %v130
    %v168 = vpop.permute.xlu0 %167
    %170 = vset.pattern.permute.xlu0 3
    %171 = vperm.xlu0 %170, %v131
    %v172 = vpop.permute.xlu0 %171
    %v174 = vmul.f32 %v168, %v132
    %v175 = vmul.f32 %v172, %v133
    %176 = vset.pattern.permute.xlu0 4
    %177 = vperm.xlu0 %176, %v130
    %v178 = vpop.permute.xlu0 %177
    %180 = vset.pattern.permute.xlu0 4
    %181 = vperm.xlu0 %180, %v131
    %v182 = vpop.permute.xlu0 %181
    %v184 = vmul.f32 %v178, %v132
    %v185 = vmul.f32 %v182, %v133
    %186 = vset.pattern.permute.xlu0 5
    %187 = vperm.xlu0 %186, %v130
    %v188 = vpop.permute.xlu0 %187
    %190 = vset.pattern.permute.xlu0 5
    %191 = vperm.xlu0 %190, %v131
    %v192 = vpop.permute.xlu0 %191
    %v194 = vmul.f32 %v188, %v132
    %v195 = vmul.f32 %v192, %v133
    %196 = vset.pattern.permute.xlu0 6
    %197 = vperm.xlu0 %196, %v130
    %v198 = vpop.permute.xlu0 %197
    %200 = vset.pattern.permute.xlu0 6
    %201 = vperm.xlu0 %200, %v131
    %v202 = vpop.permute.xlu0 %201
    %v204 = vmul.f32 %v198, %v132
    %v205 = vmul.f32 %v202, %v133
    %206 = vset.pattern.permute.xlu0 7
    %207 = vperm.xlu0 %206, %v130
    %v208 = vpop.permute.xlu0 %207
    %210 = vset.pattern.permute.xlu0 7
    %211 = vperm.xlu0 %210, %v131
    %v212 = vpop.permute.xlu0 %211
    %v214 = vmul.f32 %v208, %v132
    %v215 = vmul.f32 %v212, %v133
    %218 = vrot.lane.b32.xlu0 %v154, 32
    %v219 = vpop.permute.xlu0 %218
    %220 = vrot.lane.b32.xlu0 %v155, 32
    %v221 = vpop.permute.xlu0 %220
    %226 = vrot.lane.b32.xlu0 %v164, 64
    %v227 = vpop.permute.xlu0 %226
    %228 = vrot.lane.b32.xlu0 %v165, 64
    %v229 = vpop.permute.xlu0 %228
    %234 = vrot.lane.b32.xlu0 %v174, 96
    %v235 = vpop.permute.xlu0 %234
    %236 = vrot.lane.b32.xlu0 %v175, 96
    %v237 = vpop.permute.xlu0 %236
    %242 = vrot.lane.b32.xlu0 %v194, 32
    %v243 = vpop.permute.xlu0 %242
    %244 = vrot.lane.b32.xlu0 %v195, 32
    %v245 = vpop.permute.xlu0 %244
    %250 = vrot.lane.b32.xlu0 %v204, 64
    %v251 = vpop.permute.xlu0 %250
    %252 = vrot.lane.b32.xlu0 %v205, 64
    %v253 = vpop.permute.xlu0 %252
    %258 = vrot.lane.b32.xlu0 %v214, 96
    %v259 = vpop.permute.xlu0 %258
    %260 = vrot.lane.b32.xlu0 %v215, 96
    %v261 = vpop.permute.xlu0 %260
    %v264 = vsel %vm108, %v144, %v219
    %v265 = vsel %vm108, %v145, %v221
    %vm266 = vcmask 523264
    %v267 = vsel %vm266, %v264, %v227
    %v268 = vsel %vm266, %v265, %v229
    %vm269 = vcmask 785408
    %v270 = vsel %vm269, %v267, %v235
    %v271 = vsel %vm269, %v268, %v237
    %v272 = vsel %vm108, %v184, %v243
    %v273 = vsel %vm108, %v185, %v245
    %v274 = vsel %vm266, %v272, %v251
    %v275 = vsel %vm266, %v273, %v253
    %v276 = vsel %vm269, %v274, %v259
    %v277 = vsel %vm269, %v275, %v261
    %v278 = vpack.c.bf16 %v271, %v270
    %v279 = vpack.c.bf16 %v277, %v276
    %v280 = vld [vmem:[#allocation8] sm:$0xf]
    %v281 = vld [vmem:[#allocation8 + $0x4] sm:$0xf]
    %v282 = vld [vmem:[#allocation8 + $0x8] sm:$0xf]
    %v283 = vld [vmem:[#allocation8 + $0xc] sm:$0xf]
    %v284 = vld [vmem:[#allocation8 + $0x10] sm:$0xf]
    %v285 = vld [vmem:[#allocation8 + $0x14] sm:$0xf]
    %v286 = vld [vmem:[#allocation8 + $0x18] sm:$0xf]
    %v287 = vld [vmem:[#allocation8 + $0x1c] sm:$0xf]
    %v288 = vld [vmem:[#allocation8 + $0x20] sm:$0xf]
    %v289 = vld [vmem:[#allocation8 + $0x24] sm:$0xf]
    %v290 = vld [vmem:[#allocation8 + $0x28] sm:$0xf]
    %v291 = vld [vmem:[#allocation8 + $0x2c] sm:$0xf]
    %v292 = vld [vmem:[#allocation8 + $0x30] sm:$0xf]
    %v293 = vld [vmem:[#allocation8 + $0x34] sm:$0xf]
    %v294 = vld [vmem:[#allocation8 + $0x38] sm:$0xf]
    %v295 = vld [vmem:[#allocation8 + $0x3c] sm:$0xf]
    %v296 = vld [vmem:[#allocation8 + $0x40] sm:$0xf]
    %v297 = vld [vmem:[#allocation8 + $0x44] sm:$0xf]
    %v298 = vld [vmem:[#allocation8 + $0x48] sm:$0xf]
    %v299 = vld [vmem:[#allocation8 + $0x4c] sm:$0xf]
    %v300 = vld [vmem:[#allocation8 + $0x50] sm:$0xf]
    %v301 = vld [vmem:[#allocation8 + $0x54] sm:$0xf]
    %v302 = vld [vmem:[#allocation8 + $0x58] sm:$0xf]
    %v303 = vld [vmem:[#allocation8 + $0x5c] sm:$0xf]
    %v304 = vld [vmem:[#allocation8 + $0x60] sm:$0xf]
    %v305 = vld [vmem:[#allocation8 + $0x64] sm:$0xf]
    %v306 = vld [vmem:[#allocation8 + $0x68] sm:$0xf]
    %v307 = vld [vmem:[#allocation8 + $0x6c] sm:$0xf]
    %v308 = vld [vmem:[#allocation8 + $0x70] sm:$0xf]
    %v309 = vld [vmem:[#allocation8 + $0x74] sm:$0xf]
    %v310 = vld [vmem:[#allocation8 + $0x78] sm:$0xf]
    %v311 = vld [vmem:[#allocation8 + $0x7c] sm:$0xf]
    %v344 = vunpack.c.l.b16 %v280
    %v345 = vunpack.c.l.b16 %v281
    %v346 = vunpack.c.l.b16 %v282
    %v347 = vunpack.c.l.b16 %v283
    %v348 = vunpack.c.l.b16 %v284
    %v349 = vunpack.c.l.b16 %v285
    %v350 = vunpack.c.l.b16 %v286
    %v351 = vunpack.c.l.b16 %v287
    %v352 = vunpack.c.l.b16 %v288
    %v353 = vunpack.c.l.b16 %v289
    %v354 = vunpack.c.l.b16 %v290
    %v355 = vunpack.c.l.b16 %v291
    %v356 = vunpack.c.l.b16 %v292
    %v357 = vunpack.c.l.b16 %v293
    %v358 = vunpack.c.l.b16 %v294
    %v359 = vunpack.c.l.b16 %v295
    %v360 = vunpack.c.l.b16 %v296
    %v361 = vunpack.c.l.b16 %v297
    %v362 = vunpack.c.l.b16 %v298
    %v363 = vunpack.c.l.b16 %v299
    %v364 = vunpack.c.l.b16 %v300
    %v365 = vunpack.c.l.b16 %v301
    %v366 = vunpack.c.l.b16 %v302
    %v367 = vunpack.c.l.b16 %v303
    %v368 = vunpack.c.l.b16 %v304
    %v369 = vunpack.c.l.b16 %v305
    %v370 = vunpack.c.l.b16 %v306
    %v371 = vunpack.c.l.b16 %v307
    %v372 = vunpack.c.l.b16 %v308
    %v373 = vunpack.c.l.b16 %v309
    %v374 = vunpack.c.l.b16 %v310
    %v375 = vunpack.c.l.b16 %v311
    %v376 = vpack.c.b16 %v345, %v344
    %v377 = vpack.c.b16 %v347, %v346
    %v378 = vpack.c.b16 %v349, %v348
    %v379 = vpack.c.b16 %v351, %v350
    %v380 = vpack.c.b16 %v353, %v352
    %v381 = vpack.c.b16 %v355, %v354
    %v382 = vpack.c.b16 %v357, %v356
    %v383 = vpack.c.b16 %v359, %v358
    %v384 = vpack.c.b16 %v361, %v360
    %v385 = vpack.c.b16 %v363, %v362
    %v386 = vpack.c.b16 %v365, %v364
    %v387 = vpack.c.b16 %v367, %v366
    %v388 = vpack.c.b16 %v369, %v368
    %v389 = vpack.c.b16 %v371, %v370
    %v390 = vpack.c.b16 %v373, %v372
    %v391 = vpack.c.b16 %v375, %v374
    %408 = vmatpush.bf16.msra.mxu0 %v383
    %409 = vmatpush.bf16.msra.mxu0 %v382
    %410 = vmatpush.bf16.msra.mxu0 %v381
    %411 = vmatpush.bf16.msra.mxu0 %v380
    %412 = vmatpush.bf16.msra.mxu0 %v379
    %413 = vmatpush.bf16.msra.mxu0 %v378
    %414 = vmatpush.bf16.msra.mxu0 %v377
    %415 = vmatpush.bf16.msra.mxu0 %v376
    %416 = vmatmul.bf16.gmra.mxu0 %v278
    %v417 = vpop.f32.mrf.mxu0
    %v418 = vadd.f32 0.0, %v417
    %v419 = vpop.f32.mrf.mxu0
    %v420 = vadd.f32 0.0, %v419
    %421 = vdwg.mxu0
    %422 = vmatpush.bf16.msra.mxu0 %v391
    %423 = vmatpush.bf16.msra.mxu0 %v390
    %424 = vmatpush.bf16.msra.mxu0 %v389
    %425 = vmatpush.bf16.msra.mxu0 %v388
    %426 = vmatpush.bf16.msra.mxu0 %v387
    %427 = vmatpush.bf16.msra.mxu0 %v386
    %428 = vmatpush.bf16.msra.mxu0 %v385
    %429 = vmatpush.bf16.msra.mxu0 %v384
    %430 = vmatmul.bf16.gmra.mxu0 %v279
    %v431 = vpop.f32.mrf.mxu0
    %v432 = vadd.f32 %v418, %v431
    %v433 = vpop.f32.mrf.mxu0
    %v434 = vadd.f32 %v420, %v433
    %435 = vdwg.mxu0
    %436 = vst [vmem:[#allocation10] sm:$0xff] %v432
    %437 = vst [vmem:[#allocation10 + $0x8] sm:$0xff] %v434
    // Predicated region
    $region38: #{_lambda_.1} parent=1 // pred_check
      _
    $region39: #{_lambda_.1} parent=1 // pred_check_branch
      %439 = sbr.rel (0) target = $region41
    $region40: #{_lambda_.1} parent=1 // pred_region
      %441 = vsyncadd [#allocation4], 0
      %s442 = sshll.u32 [#allocation10], 4
      %s443 = int_to_ptr.vmem [resolvable:$true] %s442
      %s444 = sshll.u32 %s5, 4
      %s445 = int_to_ptr.hbm [resolvable:$true] %s444
      %450 = dma.vmem_to_hbm [thread:$0]  %s443, 256, %s445, [#allocation4], 128, 128, 8
    $region41: #{_lambda_.1} parent=1 // pred_fallthru
      _
    // Predicated region
    $region42: #{_lambda_.1} parent=1 // pred_check
      _
    $region43: #{_lambda_.1} parent=1 // pred_check_branch
      %452 = sbr.rel (0) target = $region45
    $region44: #{_lambda_.1} parent=1 // pred_region
      %454 = dma.done [#allocation4], 256
    $region45: #{_lambda_.1} parent=1 // pred_fallthru
      _
    %455 = vsyncpa [#allocation3], 1
    %456 = vsyncpa [#allocation6], 1
    %457 = vsyncpa [#allocation9], 1
    %458 = vsyncpa [#allocation4], 1

</llo_original>
